<compile_context>
chip_gen: v6e
topology: v6e:2x2x1
jax: 0.10.0
libtpu: 0.0.40
codegen_flags: <defaults>
</compile_context>

<pallas_src>
import functools

import jax
import jax.numpy as jnp
from jax import lax
from jax.experimental import pallas as pl
from jax.experimental.pallas import tpu as pltpu

ALPHA = 0.9
GAMMA = 3.0


def _power(x, gamma):
    """x ** gamma; exact VPU multiply chain when gamma is a small integer."""
    g = float(gamma)
    if g.is_integer() and 0 <= int(g) <= 32:
        p = int(g)
        acc, base = None, x
        while p:
            if p & 1:
                acc = base if acc is None else acc * base
            p >>= 1
            if p:
                base = base * base
        return acc if acc is not None else jnp.ones_like(x)
    return x ** jnp.float32(g)  # generic fallback (EUP exp/log)


def _focal_loss_kernel(logits_ref, targets_ref, out_ref, *, n_total, gamma):
    i = pl.program_id(0)

    logits = logits_ref[...].astype(jnp.float32)   # (TILE_N, C)
    targets = targets_ref[...]                     # (TILE_N, 1) int32
    tn, c = logits.shape

    # Numerically stable log-softmax pieces; exp over (TILE_N, C) is the only
    # large transcendental stream.
    row_max = jnp.max(logits, axis=-1, keepdims=True)            # (TILE_N, 1)
    shifted = logits - row_max                                    # (TILE_N, C)
    sumexp = jnp.sum(jnp.exp(shifted), axis=-1, keepdims=True)    # (TILE_N, 1)

    # True-class pick: masked select + sum (no one-hot convert/multiply, no
    # dynamic gather on TPU).
    # TODO(synk): if still VALU-bound on v7x, pre-materialize this iota once in
    # a VMEM scratch and reload it (vld slots have slack here).
    class_ids = lax.broadcasted_iota(jnp.int32, (tn, c), 1)
    tgt_shifted = jnp.sum(jnp.where(class_ids == targets, shifted, 0.0),
                          axis=-1, keepdims=True)                 # (TILE_N, 1)

    # ce = logsumexp - target_logit (row_max cancels); pt = exp(-ce).
    ce = jnp.log(sumexp) - tgt_shifted                            # (TILE_N, 1)
    pt = jnp.exp(-ce)                                             # (TILE_N, 1)

    # (1 - pt)^gamma, clamped so a pt overshooting 1 by a ulp stays NaN-free.
    u = jnp.maximum(1.0 - pt, 0.0)
    focal = (ALPHA * ce) * _power(u, gamma)                       # (TILE_N, 1)

    # Mask padded rows of a partial last tile immediately before the sum so
    # they contribute exactly 0 (and any garbage/NaN in padded rows is dropped).
    row_ids = i * tn + lax.broadcasted_iota(jnp.int32, (tn, 1), 0)
    focal = jnp.where(row_ids < n_total, focal, 0.0)

    # Per-tile partial sum splatted into a lane-aligned (1, 1, 128) block.
    # Independent output block per grid step -> the row axis can be "parallel".
    out_ref[...] = jnp.zeros(out_ref.shape, jnp.float32) + jnp.sum(focal)


def focal_loss(logits, targets, tile_n=None):
    """logits: (N, C) float (f32 or, preferably for bandwidth, bf16);
    targets: (N,) int class ids.  Returns scalar f32 mean focal loss
    (reduction='mean'), matching the PyTorch FocalLoss module."""
    n, c = logits.shape
    targets2d = targets.astype(jnp.int32).reshape(n, 1)
    itemsize = jnp.dtype(logits.dtype).itemsize

    # Byte-budgeted row tile:
    #   streamed (double-buffered): logits row (C*itemsize) + lane-padded
    #   int32 targets row (512 B);
    #   in-kernel f32 working set: ~3 (TILE_N, C) temps (shifted / exp /
    #   iota-compare) + a few live lane-padded (TILE_N, 1) column stats.
    per_row = 2 * (c * itemsize + 512) + (3 * c * 4 + 1536)
    if tile_n is None:
        budget = 24 * 1024 * 1024
        tile_n = budget // per_row
    tile_n = max(8, min(int(tile_n), 8192))
    tile_n = (tile_n // 8) * 8
    n_pad8 = ((n + 7) // 8) * 8
    tile_n = min(tile_n, n_pad8)
    num_tiles = pl.cdiv(n, tile_n)
    grid = (num_tiles,)

    kernel = functools.partial(_focal_loss_kernel, n_total=n, gamma=GAMMA)

    cost = pl.CostEstimate(
        flops=10 * n * c + 16 * n,
        transcendentals=n * c + 3 * n,
        bytes_accessed=n * c * itemsize + n * 4 + num_tiles * 512,
    )

    # Scoped VMEM: actual residency + 25% headroom, capped for v7x's 64 MiB/TC,
    # floored at v5e's 16 MiB scoped default.
    resident = tile_n * per_row
    vmem_limit = int(min(40 * 1024 * 1024,
                         max(16 * 1024 * 1024, int(resident * 1.25))))

    partials = pl.pallas_call(
        kernel,
        out_shape=jax.ShapeDtypeStruct((num_tiles, 1, 128), jnp.float32),
        grid_spec=pltpu.PrefetchScalarGridSpec(
            num_scalar_prefetch=0,
            grid=grid,
            in_specs=[
                pl.BlockSpec((tile_n, c), lambda i: (i, 0)),
                pl.BlockSpec((tile_n, 1), lambda i: (i, 0)),
            ],
            out_specs=pl.BlockSpec((1, 1, 128), lambda i: (i, 0, 0)),
        ),
        compiler_params=pltpu.CompilerParams(
            # Each step writes a disjoint partial -> shard rows across the two
            # v7x TensorCores; measured no-op on single-TC v5e/v6e.
            dimension_semantics=("parallel",),
            vmem_limit_bytes=vmem_limit,
        ),
        cost_estimate=cost,
    )(logits, targets2d)

    return jnp.sum(partials[:, 0, 0]) / jnp.float32(n)


def focal_loss_ref(logits, targets):
    """Pure-JAX reference replicating the PyTorch module (reduction='mean')."""
    logits = logits.astype(jnp.float32)
    lse = jax.scipy.special.logsumexp(logits, axis=-1)
    tgt = jnp.take_along_axis(logits, targets[:, None].astype(jnp.int32), axis=-1)[:, 0]
    ce = lse - tgt
    pt = jnp.exp(-ce)
    focal = ALPHA * (1.0 - pt) ** GAMMA * ce
    return jnp.mean(focal)


if __name__ == "__main__":
    key = jax.random.PRNGKey(0)
    k1, k2, k3, k4 = jax.random.split(key, 4)

    # Small demo shape matching the module's forward: (N, C) logits + (N,) ids.
    N, C = 8, 4
    logits = jax.random.normal(k1, (N, C), dtype=jnp.float32)
    targets = jax.random.randint(k2, (N,), 0, C, dtype=jnp.int32)

    out = focal_loss(logits, targets)
    jax.block_until_ready(out)
    ref = focal_loss_ref(logits, targets)
    assert jnp.allclose(out, ref, atol=1e-5, rtol=1e-5), (out, ref)

    # Multi-tile grid + partial-last-tile masking + per-tile partial reduction
    # (N not a tile multiple).
    N2, C2 = 100, 32
    logits2 = jax.random.normal(k3, (N2, C2), dtype=jnp.float32)
    targets2 = jax.random.randint(k4, (N2,), 0, C2, dtype=jnp.int32)
    out2 = focal_loss(logits2, targets2, tile_n=16)
    jax.block_until_ready(out2)
    ref2 = focal_loss_ref(logits2, targets2)
    assert jnp.allclose(out2, ref2, atol=1e-5, rtol=1e-5), (out2, ref2)

    # Default (byte-budgeted tile) path + bf16 streaming (halves HBM bytes;
    # kernel computes in f32).
    out3 = focal_loss(logits2.astype(jnp.bfloat16), targets2)
    jax.block_until_ready(out3)
    ref3 = focal_loss_ref(logits2.astype(jnp.bfloat16), targets2)
    assert jnp.allclose(out3, ref3, atol=1e-4, rtol=1e-4), (out3, ref3)

    print("KERNEL_OK")
</pallas_src>

<mosaic_0001>
module attributes {stable_mosaic.version = 11 : i64} {
  func.func @_focal_loss_kernel(%arg0: i32, %arg1: memref<8x4xf32, #tpu.memory_space<vmem>>, %arg2: memref<8x1xi32, #tpu.memory_space<vmem>>, %arg3: memref<1x1x128xf32, #tpu.memory_space<vmem>>) attributes {dimension_semantics = [#tpu.dimension_semantics<parallel>], iteration_bounds = array<i64: 1>, scalar_prefetch = 0 : i64, scratch_operands = 0 : i64, tpu.core_type = #tpu.core_type<tc>, window_params = [{transform_indices = @transform_0, window_bounds = array<i64: 8, 4>}, {transform_indices = @transform_1, window_bounds = array<i64: 8, 1>}, {transform_indices = @transform_2, window_bounds = array<i64: 1, 1, 128>}]} {
    %c0 = arith.constant 0 : index
    %c0_0 = arith.constant 0 : index
    %0 = vector.load %arg1[%c0, %c0_0] : memref<8x4xf32, #tpu.memory_space<vmem>>, vector<8x4xf32>
    %c0_1 = arith.constant 0 : index
    %c0_2 = arith.constant 0 : index
    %1 = vector.load %arg2[%c0_1, %c0_2] : memref<8x1xi32, #tpu.memory_space<vmem>>, vector<8x1xi32>
    %cst = arith.constant dense<0xFF800000> : vector<8xf32>
    %2 = vector.multi_reduction <maximumf>, %0, %cst [1] : vector<8x4xf32> to vector<8xf32>
    %3 = vector.shape_cast %2 : vector<8xf32> to vector<8x1xf32>
    %4 = vector.broadcast %3 : vector<8x1xf32> to vector<8x4xf32>
    %5 = arith.subf %0, %4 : vector<8x4xf32>
    %6 = math.exp %5 : vector<8x4xf32>
    %cst_3 = arith.constant dense<0.000000e+00> : vector<8xf32>
    %7 = vector.multi_reduction <add>, %6, %cst_3 [1] : vector<8x4xf32> to vector<8xf32>
    %8 = vector.shape_cast %7 : vector<8xf32> to vector<8x1xf32>
    %9 = tpu.iota {dimensions = array<i32: 1>} : vector<8x4xi32>
    %10 = vector.broadcast %1 : vector<8x1xi32> to vector<8x4xi32>
    %11 = arith.cmpi eq, %9, %10 : vector<8x4xi32>
    %cst_4 = arith.constant 0.000000e+00 : f32
    %12 = vector.broadcast %cst_4 : f32 to vector<8x4xf32>
    %13 = arith.select %11, %5, %12 : vector<8x4xi1>, vector<8x4xf32>
    %cst_5 = arith.constant dense<0.000000e+00> : vector<8xf32>
    %14 = vector.multi_reduction <add>, %13, %cst_5 [1] : vector<8x4xf32> to vector<8xf32>
    %15 = vector.shape_cast %14 : vector<8xf32> to vector<8x1xf32>
    %16 = math.log %8 : vector<8x1xf32>
    %17 = arith.subf %16, %15 : vector<8x1xf32>
    %cst_6 = arith.constant 0.000000e+00 : f32
    %18 = vector.broadcast %cst_6 : f32 to vector<8x1xf32>
    %19 = arith.subf %18, %17 : vector<8x1xf32>
    %20 = math.exp %19 : vector<8x1xf32>
    %cst_7 = arith.constant 1.000000e+00 : f32
    %21 = vector.broadcast %cst_7 : f32 to vector<8x1xf32>
    %22 = arith.subf %21, %20 : vector<8x1xf32>
    %cst_8 = arith.constant 0.000000e+00 : f32
    %23 = vector.broadcast %cst_8 : f32 to vector<8x1xf32>
    %24 = arith.maximumf %22, %23 : vector<8x1xf32>
    %cst_9 = arith.constant 0.899999976 : f32
    %25 = vector.broadcast %cst_9 : f32 to vector<8x1xf32>
    %26 = arith.mulf %25, %17 : vector<8x1xf32>
    %27 = arith.mulf %24, %24 : vector<8x1xf32>
    %28 = arith.mulf %24, %27 : vector<8x1xf32>
    %29 = arith.mulf %26, %28 : vector<8x1xf32>
    %c8_i32 = arith.constant 8 : i32
    %30 = arith.muli %arg0, %c8_i32 : i32
    %31 = tpu.iota {dimensions = array<i32: 0>} : vector<8x1xi32>
    %32 = vector.broadcast %30 : i32 to vector<8x1xi32>
    %33 = arith.addi %32, %31 : vector<8x1xi32>
    %c8_i32_10 = arith.constant 8 : i32
    %34 = vector.broadcast %c8_i32_10 : i32 to vector<8x1xi32>
    %35 = arith.cmpi slt, %33, %34 : vector<8x1xi32>
    %cst_11 = arith.constant 0.000000e+00 : f32
    %36 = vector.broadcast %cst_11 : f32 to vector<8x1xf32>
    %37 = arith.select %35, %29, %36 : vector<8x1xi1>, vector<8x1xf32>
    %cst_12 = arith.constant 0.000000e+00 : f32
    %38 = vector.broadcast %cst_12 : f32 to vector<1x1x128xf32>
    %39 = vector.shape_cast %37 : vector<8x1xf32> to vector<1x8x1xf32>
    %cst_13 = arith.constant dense<0.000000e+00> : vector<1xf32>
    %40 = vector.multi_reduction <add>, %39, %cst_13 [1, 2] : vector<1x8x1xf32> to vector<1xf32>
    %41 = vector.shape_cast %40 : vector<1xf32> to vector<1x1x1xf32>
    %42 = vector.extract %41[0, 0, 0] : f32 from vector<1x1x1xf32>
    %43 = vector.broadcast %42 : f32 to vector<1x1x128xf32>
    %44 = arith.addf %38, %43 : vector<1x1x128xf32>
    %c0_14 = arith.constant 0 : index
    %c0_15 = arith.constant 0 : index
    %c0_16 = arith.constant 0 : index
    %45 = vector.load %arg3[%c0_14, %c0_15, %c0_16] : memref<1x1x128xf32, #tpu.memory_space<vmem>>, vector<1x1x128xf32>
    tpu.vector_store %arg3[%c0_14, %c0_15, %c0_16], %44 {strides = array<i32>} : memref<1x1x128xf32, #tpu.memory_space<vmem>>, vector<1x1x128xf32>,
    return
  }
  func.func @transform_0(%arg0: i32) -> (i32, i32) {
    %c0_i32 = arith.constant 0 : i32
    %c0_i32_0 = arith.constant 0 : i32
    return %arg0, %c0_i32 : i32, i32
  }
  func.func @transform_1(%arg0: i32) -> (i32, i32) {
    %c0_i32 = arith.constant 0 : i32
    %c0_i32_0 = arith.constant 0 : i32
    return %arg0, %c0_i32 : i32, i32
  }
  func.func @transform_2(%arg0: i32) -> (i32, i32, i32) {
    %c0_i32 = arith.constant 0 : i32
    %c0_i32_0 = arith.constant 0 : i32
    %c0_i32_1 = arith.constant 0 : i32
    return %arg0, %c0_i32, %c0_i32_0 : i32, i32, i32
  }
}

</mosaic_0001>

<llo_original>
// kernel: tpu_custom_call.1
$region0: #{tpu_custom_call.1}
  #allocation0 [shape = 'u32[]', space=smem, size = 0x4, offset = 0x4, fixed_abs, tag = 'smem constant byte address 0x4 - core index']
  #allocation1 [shape = 'u32[144,128]{1,0:T(1,128)}', space=vmem, size = 0x12000, scoped, tag = 'internal scratch']
  %s0 = inlined_call_operand.vmem [shape: f32[8,4], index: 0, kind: input, shape index: {}]
  %s1 = inlined_call_operand.vmem [shape: s32[8,1], index: 1, kind: input, shape index: {}]
  %s2 = inlined_call_operand.hbm [shape: f32[1,1,128], index: 2, kind: output, shape index: {}]
  %s3 = sld [smem:[#allocation0]]
  $region18: #{tpu_custom_call.1} parent=0
    _
  %s5 = ssub.s32 1, %s3
  %s6 = scalar_select 0, %s5, %s3
  $region1: #{tpu_custom_call.1} parent=0
    #allocation2 [shape = 'u8[512]{0}', space=vmem, size = 0x400, scoped, tag = 'output window, operand 0, single buffered']
    #allocation3 [shape = 's32[1]{0}', space=sflag, size = 0x4, scoped, tag = 'scoped memory for tpu_custom_call.1']
    %7 = vsyncpa [#allocation3], 0
    // Predicated region
    $region2: #{tpu_custom_call.1} parent=1 // pred_check
      _
    $region3: #{tpu_custom_call.1} parent=1 // pred_check_branch
      %9 = sbr.rel (0) target = $region5
    $region4: #{tpu_custom_call.1} parent=1 // pred_region
      _
    $region5: #{tpu_custom_call.1} parent=1 // pred_fallthru
      _
    // Predicated region
    $region6: #{tpu_custom_call.1} parent=1 // pred_check
      _
    $region7: #{tpu_custom_call.1} parent=1 // pred_check_branch
      %11 = sbr.rel (0) target = $region9
    $region8: #{tpu_custom_call.1} parent=1 // pred_region
      _
    $region9: #{tpu_custom_call.1} parent=1 // pred_fallthru
      _
    %v12 = vld [vmem:[%s0] sm:$0xff]
    %v13 = vld [vmem:[%s1] sm:$0xff]
    %vm14 = vcmask 31744
    %v15 = vsel %vm14, %v12, -inf
    %16 = vmax.xlane.f32.xlu0 %v15
    %v17 = vpop.xlane.xlu0 %16
    %v18 = vsub.f32 %v12, %v17
    %v19 = vmul.f32 %v18, 1.442695
    %v20 = vpow.pop %v19
    %v21 = vsel %vm14, %v20, 0.0
    %22 = vadd.xlane.f32.xlu0 %v21
    %v23 = vpop.xlane.xlu0 %22
    %v24 = vlaneseq
    %v25 = vand.u32 %v24, 127
    %26 = vset.pattern.permute.xlu0 0
    %27 = vperm.xlu0 %26, %v13
    %v28 = vpop.permute.xlu0 %27
    %vm29 = vcmp.eq.s32.totalorder %v25, %v28
    %v30 = vsel %vm29, %v18, 0.0
    %v31 = vsel %vm14, %v30, 0.0
    %32 = vadd.xlane.f32.xlu0 %v31
    %v33 = vpop.xlane.xlu0 %32
    %v34 = vlog2.pop %v23
    %v35 = vmul.f32 %v34, 0.6931472
    %v36 = vsub.f32 %v35, %v33
    %v37 = vsub.f32 0.0, %v36
    %v38 = vmul.f32 %v37, 1.442695
    %v39 = vpow.pop %v38
    %v40 = vsub.f32 1.0, %v39
    %v41 = vmax.f32 %v40, 0.0
    %v42 = vmul.f32 %v36, 0.9
    %v43 = vmul.f32 %v41, %v41
    %v44 = vmul.f32 %v41, %v43
    %v45 = vmul.f32 %v42, %v44
    %s46 = smul.u32 0, 8
    %v47 = vlaneseq
    %v48 = vshrl.u32 %v47, 7
    %v49 = vstv %s46
    %v50 = vadd.s32 %v49, %v48
    %vm51 = vcmp.lt.s32.totalorder %v50, 8
    %v52 = vsel %vm51, %v45, 0.0
    %vm53 = vcmask 7168
    %v54 = vsel %vm53, %v52, 0.0
    %55 = vadd.xlane.f32.xlu0 %v54
    %v56 = vpop.xlane.xlu0 %55
    %v57 = vrot.slane %v56, 4
    %v58 = vadd.f32 %v56, %v57
    %v59 = vrot.slane %v58, 2
    %v60 = vadd.f32 %v58, %v59
    %v61 = vrot.slane %v60, 1
    %v62 = vadd.f32 %v60, %v61
    %s63 = vtos %v62
    %v64 = vstv %s63
    %v65 = vadd.f32 %v64, 0.0
    %66 = vst [vmem:[#allocation2] sm:$0x1] %v65
    // Predicated region
    $region10: #{tpu_custom_call.1} parent=1 // pred_check
      _
    $region11: #{tpu_custom_call.1} parent=1 // pred_check_branch
      %68 = sbr.rel (0) target = $region13
    $region12: #{tpu_custom_call.1} parent=1 // pred_region
      %s70 = ssub.s32 16, 16
      %71 = vsyncadd [#allocation3], %s70
      %s73 = sshll.u32 [#allocation2], 4
      %s74 = int_to_ptr.vmem [resolvable:$true] %s73
      %76 = dma.vmem_to_hbm [thread:$0]  %s74, 16, %s2, [#allocation3]
    $region13: #{tpu_custom_call.1} parent=1 // pred_fallthru
      _
    // Predicated region
    $region14: #{tpu_custom_call.1} parent=1 // pred_check
      _
    $region15: #{tpu_custom_call.1} parent=1 // pred_check_branch
      %78 = sbr.rel (0) target = $region17
    $region16: #{tpu_custom_call.1} parent=1 // pred_region
      %79 = dma.done [#allocation3], 16
    $region17: #{tpu_custom_call.1} parent=1 // pred_fallthru
      _
    %80 = vsyncpa [#allocation3], 1

</llo_original>
